<compile_context>
chip_gen: v5e
topology: v5e:2x2
jax: 0.10.0
libtpu: 0.0.40
codegen_flags: <defaults>
</compile_context>

<pallas_src>
import jax
import jax.numpy as jnp
from jax.experimental import pallas as pl
from jax.experimental.pallas import tpu as pltpu

IN_DIM = 128 * 4 * 4   # 2048
HID = 128
OUT = 10
OUT_PAD = 128          # lane-dense class axis
NEG_BIG = -1e30        # forces padded logits to exactly-zero probability


def _round_up(x, m):
    return ((x + m - 1) // m) * m


def _mlp_softmax_kernel(x_ref, w1_ref, b1_ref, w2_ref, b2_ref, o_ref):
    # fc1: bf16 operands, f32 accumulation on the MXU, then bias + ReLU.
    h = jnp.dot(x_ref[...], w1_ref[...], preferred_element_type=jnp.float32)
    h = jnp.maximum(h + b1_ref[...], 0.0)
    # dropout(p=0.25): identity in eval mode.
    # fc2 into the lane-padded class axis; padded columns of W2^T are zero and
    # padded bias slots are -1e30, so they contribute nothing to the softmax.
    logits = jnp.dot(h, w2_ref[...], preferred_element_type=jnp.float32)
    logits = logits + b2_ref[...]
    # Numerically-stable softmax over the (padded) class axis.
    m = jnp.max(logits, axis=1, keepdims=True)
    e = jnp.exp(logits - m)
    denom = jnp.sum(e, axis=1, keepdims=True)
    # Exact normalization (approx reciprocal was not accurate enough for
    # sum(probs) == 1 to ~1e-3).
    o_ref[...] = (e / denom).astype(o_ref.dtype)


def prepare_params(w1, b1, w2, b2):
    """One-time (outside the hot path) parameter prep.
    w1: [HID, IN_DIM], b1: [HID], w2: [OUT, HID], b2: [OUT] (nn.Linear layout).
    Returns (W1^T bf16 [IN_DIM,HID], b1 [1,HID] f32,
             W2^T padded f32 [HID,OUT_PAD], b2 padded f32 [1,OUT_PAD])."""
    w1_t = jnp.asarray(w1, jnp.bfloat16).T                       # [IN_DIM, HID]
    b1_2d = jnp.asarray(b1, jnp.float32).reshape(1, HID)
    w2_t = jnp.asarray(w2, jnp.float32).T                        # [HID, OUT]
    w2_pad = jnp.zeros((HID, OUT_PAD), jnp.float32).at[:, :OUT].set(w2_t)
    b2_pad = jnp.full((1, OUT_PAD), NEG_BIG, jnp.float32)
    b2_pad = b2_pad.at[0, :OUT].set(jnp.asarray(b2, jnp.float32))
    return w1_t, b1_2d, w2_pad, b2_pad


def partial_model_2(x, params):
    """x: [B, 2048] (any float dtype; cast to bf16).  params: prepare_params(...).
    Returns softmax probabilities [B, 10] in f32."""
    w1_t, b1_2d, w2_pad, b2_pad = params
    B = x.shape[0]
    x = x.astype(jnp.bfloat16)

    # Batch tile: large enough to fill the MXU / pipeline at big B, capped at
    # 512 rows so double-buffered x tiles stay far under the VMEM budget.
    TB = min(512, _round_up(B, 16))            # 16-row alignment for bf16 tiles
    B_pad = _round_up(B, TB)
    if B_pad != B:
        x = jnp.pad(x, ((0, B_pad - B), (0, 0)))

    out = pl.pallas_call(
        _mlp_softmax_kernel,
        out_shape=jax.ShapeDtypeStruct((B_pad, OUT_PAD), jnp.float32),
        grid=(pl.cdiv(B_pad, TB),),
        in_specs=[
            pl.BlockSpec((TB, IN_DIM), lambda i: (i, 0)),     # x tile (pipelined)
            pl.BlockSpec((IN_DIM, HID), lambda i: (0, 0)),    # W1^T (resident)
            pl.BlockSpec((1, HID), lambda i: (0, 0)),         # b1
            pl.BlockSpec((HID, OUT_PAD), lambda i: (0, 0)),   # W2^T padded
            pl.BlockSpec((1, OUT_PAD), lambda i: (0, 0)),     # b2 padded
        ],
        out_specs=pl.BlockSpec((TB, OUT_PAD), lambda i: (i, 0)),
        compiler_params=pltpu.CompilerParams(
            dimension_semantics=("parallel",)),
    )(x, w1_t, b1_2d, w2_pad, b2_pad)
    return out[:B, :OUT]


def _reference(x, w1, b1, w2, b2):
    # Reference with the same bf16 rounding of x / W1 as the kernel.
    xb = x.astype(jnp.bfloat16).astype(jnp.float32)
    w1b = w1.astype(jnp.bfloat16).astype(jnp.float32)
    h = jnp.maximum(xb @ w1b.T + b1, 0.0)
    logits = h @ w2.T + b2
    return jax.nn.softmax(logits, axis=1)


if __name__ == "__main__":
    key = jax.random.PRNGKey(0)
    kx, k1, kb1, k2, kb2 = jax.random.split(key, 5)

    B = 8  # small batch for the self-test
    x = jax.random.normal(kx, (B, IN_DIM), dtype=jnp.float32)

    # Deterministic synthetic parameters (nn.Linear shapes).
    w1 = jax.random.normal(k1, (HID, IN_DIM), dtype=jnp.float32) * 0.02
    b1 = jax.random.normal(kb1, (HID,), dtype=jnp.float32) * 0.02
    w2 = jax.random.normal(k2, (OUT, HID), dtype=jnp.float32) * 0.02
    b2 = jax.random.normal(kb2, (OUT,), dtype=jnp.float32) * 0.02

    # One-time parameter prep (outside the per-call hot path).
    params = prepare_params(w1, b1, w2, b2)

    y = partial_model_2(x, params)
    y = jax.block_until_ready(y)

    y_ref = _reference(x, w1, b1, w2, b2)
    assert y.shape == (B, OUT)
    assert jnp.allclose(y, y_ref, atol=1e-3, rtol=1e-3), (
        f"max abs err {jnp.max(jnp.abs(y - y_ref))}")
    assert jnp.allclose(jnp.sum(y, axis=1), 1.0, atol=1e-3), (
        f"row sums {jnp.sum(y, axis=1)}")

    print("KERNEL_OK")
</pallas_src>

<mosaic_0001>
module attributes {stable_mosaic.version = 11 : i64} {
  func.func @_mlp_softmax_kernel(%arg0: i32, %arg1: memref<16x2048xbf16, #tpu.memory_space<vmem>>, %arg2: memref<2048x128xbf16, #tpu.memory_space<vmem>>, %arg3: memref<1x128xf32, #tpu.memory_space<vmem>>, %arg4: memref<128x128xf32, #tpu.memory_space<vmem>>, %arg5: memref<1x128xf32, #tpu.memory_space<vmem>>, %arg6: memref<16x128xf32, #tpu.memory_space<vmem>>) attributes {dimension_semantics = [#tpu.dimension_semantics<parallel>], iteration_bounds = array<i64: 1>, scalar_prefetch = 0 : i64, scratch_operands = 0 : i64, tpu.core_type = #tpu.core_type<tc>, window_params = [{transform_indices = @transform_0, window_bounds = array<i64: 16, 2048>}, {pipeline_mode = #tpu.pipeline_mode<synchronous>, transform_indices = @transform_1, window_bounds = array<i64: 2048, 128>}, {pipeline_mode = #tpu.pipeline_mode<synchronous>, transform_indices = @transform_2, window_bounds = array<i64: 1, 128>}, {pipeline_mode = #tpu.pipeline_mode<synchronous>, transform_indices = @transform_3, window_bounds = array<i64: 128, 128>}, {pipeline_mode = #tpu.pipeline_mode<synchronous>, transform_indices = @transform_4, window_bounds = array<i64: 1, 128>}, {transform_indices = @transform_5, window_bounds = array<i64: 16, 128>}]} {
    %c0 = arith.constant 0 : index
    %c0_0 = arith.constant 0 : index
    %0 = vector.load %arg1[%c0, %c0_0] : memref<16x2048xbf16, #tpu.memory_space<vmem>>, vector<16x2048xbf16>
    %c0_1 = arith.constant 0 : index
    %c0_2 = arith.constant 0 : index
    %1 = vector.load %arg2[%c0_1, %c0_2] : memref<2048x128xbf16, #tpu.memory_space<vmem>>, vector<2048x128xbf16>
    %cst = arith.constant dense<0.000000e+00> : vector<16x128xf32>
    %2 = tpu.matmul %0, %1, %cst {dimension_numbers = #tpu.dot_dimension_numbers<[1], [0], [0], [1], [0, 0, 1, 1], [], []>} : vector<16x2048xbf16>, vector<2048x128xbf16>, vector<16x128xf32> -> vector<16x128xf32>
    %c0_3 = arith.constant 0 : index
    %c0_4 = arith.constant 0 : index
    %3 = vector.load %arg3[%c0_3, %c0_4] : memref<1x128xf32, #tpu.memory_space<vmem>>, vector<1x128xf32>
    %4 = vector.broadcast %3 : vector<1x128xf32> to vector<16x128xf32>
    %5 = arith.addf %2, %4 : vector<16x128xf32>
    %cst_5 = arith.constant 0.000000e+00 : f32
    %6 = vector.broadcast %cst_5 : f32 to vector<16x128xf32>
    %7 = arith.maximumf %5, %6 : vector<16x128xf32>
    %c0_6 = arith.constant 0 : index
    %c0_7 = arith.constant 0 : index
    %8 = vector.load %arg4[%c0_6, %c0_7] : memref<128x128xf32, #tpu.memory_space<vmem>>, vector<128x128xf32>
    %cst_8 = arith.constant dense<0.000000e+00> : vector<16x128xf32>
    %9 = tpu.matmul %7, %8, %cst_8 {dimension_numbers = #tpu.dot_dimension_numbers<[1], [0], [0], [1], [0, 0, 1, 1], [], []>} : vector<16x128xf32>, vector<128x128xf32>, vector<16x128xf32> -> vector<16x128xf32>
    %c0_9 = arith.constant 0 : index
    %c0_10 = arith.constant 0 : index
    %10 = vector.load %arg5[%c0_9, %c0_10] : memref<1x128xf32, #tpu.memory_space<vmem>>, vector<1x128xf32>
    %11 = vector.broadcast %10 : vector<1x128xf32> to vector<16x128xf32>
    %12 = arith.addf %9, %11 : vector<16x128xf32>
    %cst_11 = arith.constant dense<0xFF800000> : vector<16xf32>
    %13 = vector.multi_reduction <maximumf>, %12, %cst_11 [1] : vector<16x128xf32> to vector<16xf32>
    %14 = vector.shape_cast %13 : vector<16xf32> to vector<16x1xf32>
    %15 = vector.broadcast %14 : vector<16x1xf32> to vector<16x128xf32>
    %16 = arith.subf %12, %15 : vector<16x128xf32>
    %17 = math.exp %16 : vector<16x128xf32>
    %cst_12 = arith.constant dense<0.000000e+00> : vector<16xf32>
    %18 = vector.multi_reduction <add>, %17, %cst_12 [1] : vector<16x128xf32> to vector<16xf32>
    %19 = vector.shape_cast %18 : vector<16xf32> to vector<16x1xf32>
    %20 = vector.broadcast %19 : vector<16x1xf32> to vector<16x128xf32>
    %21 = arith.divf %17, %20 : vector<16x128xf32>
    %c0_13 = arith.constant 0 : index
    %c0_14 = arith.constant 0 : index
    %22 = vector.load %arg6[%c0_13, %c0_14] : memref<16x128xf32, #tpu.memory_space<vmem>>, vector<16x128xf32>
    tpu.vector_store %arg6[%c0_13, %c0_14], %21 {strides = array<i32>} : memref<16x128xf32, #tpu.memory_space<vmem>>, vector<16x128xf32>,
    return
  }
  func.func @transform_0(%arg0: i32) -> (i32, i32) {
    %c0_i32 = arith.constant 0 : i32
    %c0_i32_0 = arith.constant 0 : i32
    return %arg0, %c0_i32 : i32, i32
  }
  func.func @transform_1(%arg0: i32) -> (i32, i32) {
    %c0_i32 = arith.constant 0 : i32
    %c0_i32_0 = arith.constant 0 : i32
    %c0_i32_1 = arith.constant 0 : i32
    return %c0_i32, %c0_i32_0 : i32, i32
  }
  func.func @transform_2(%arg0: i32) -> (i32, i32) {
    %c0_i32 = arith.constant 0 : i32
    %c0_i32_0 = arith.constant 0 : i32
    %c0_i32_1 = arith.constant 0 : i32
    return %c0_i32, %c0_i32_0 : i32, i32
  }
  func.func @transform_3(%arg0: i32) -> (i32, i32) {
    %c0_i32 = arith.constant 0 : i32
    %c0_i32_0 = arith.constant 0 : i32
    %c0_i32_1 = arith.constant 0 : i32
    return %c0_i32, %c0_i32_0 : i32, i32
  }
  func.func @transform_4(%arg0: i32) -> (i32, i32) {
    %c0_i32 = arith.constant 0 : i32
    %c0_i32_0 = arith.constant 0 : i32
    %c0_i32_1 = arith.constant 0 : i32
    return %c0_i32, %c0_i32_0 : i32, i32
  }
  func.func @transform_5(%arg0: i32) -> (i32, i32) {
    %c0_i32 = arith.constant 0 : i32
    %c0_i32_0 = arith.constant 0 : i32
    return %arg0, %c0_i32 : i32, i32
  }
}

</mosaic_0001>

<llo_original>
// kernel: tpu_custom_call.1
$region0: #{tpu_custom_call.1}
  #allocation0 [shape = 'u32[]', space=smem, size = 0x4, offset = 0x4, fixed_abs, tag = 'smem constant byte address 0x4 - core index']
  #allocation1 [shape = 'u32[72,128]{1,0:T(1,128)}', space=vmem, size = 0x9000, scoped, tag = 'internal scratch']
  %s0 = inlined_call_operand.hbm [shape: bf16[16,2048], index: 0, kind: input, shape index: {}]
  %s1 = inlined_call_operand.hbm [shape: bf16[2048,128], index: 1, kind: input, shape index: {}]
  %s2 = inlined_call_operand.vmem [shape: f32[1,128], index: 2, kind: input, shape index: {}]
  %s3 = inlined_call_operand.hbm [shape: f32[128,128], index: 3, kind: input, shape index: {}]
  %s4 = inlined_call_operand.vmem [shape: f32[1,128], index: 4, kind: input, shape index: {}]
  %s5 = inlined_call_operand.hbm [shape: f32[16,128], index: 5, kind: output, shape index: {}]
  %s6 = sld [smem:[#allocation0]]
  $region42: #{tpu_custom_call.1} parent=0
    _
  %s8 = ssub.s32 1, %s6
  %s9 = scalar_select 0, %s8, %s6
  $region1: #{tpu_custom_call.1} parent=0
    #allocation2 [shape = 'u8[65536]{0}', space=vmem, size = 0x10000, scoped, tag = 'input window, operand 0, single buffered']
    #allocation3 [shape = 's32[1]{0}', space=sflag, size = 0x4, scoped, tag = 'scoped memory for tpu_custom_call.1']
    #allocation4 [shape = 's32[1]{0}', space=sflag, size = 0x4, scoped, tag = 'scoped memory for tpu_custom_call.1']
    #allocation5 [shape = 'u8[524288]{0}', space=vmem, size = 0x80000, scoped, tag = 'input window, operand 1, single buffered']
    #allocation6 [shape = 's32[1]{0}', space=sflag, size = 0x4, scoped, tag = 'scoped memory for tpu_custom_call.1']
    #allocation7 [shape = 'u8[65536]{0}', space=vmem, size = 0x10000, scoped, tag = 'input window, operand 3, single buffered']
    #allocation8 [shape = 'u8[8192]{0}', space=vmem, size = 0x2000, scoped, tag = 'output window, operand 0, single buffered']
    %10 = vsyncpa [#allocation3], 0
    %11 = vsyncpa [#allocation6], 0
    %12 = vsyncpa [#allocation4], 0
    // Predicated region
    $region2: #{tpu_custom_call.1} parent=1 // pred_check
      _
    $region3: #{tpu_custom_call.1} parent=1 // pred_check_branch
      %14 = sbr.rel (0) target = $region5
    $region4: #{tpu_custom_call.1} parent=1 // pred_region
      %16 = vsyncadd [#allocation3], 0
      %s17 = sshll.u32 %s0, 4
      %s18 = int_to_ptr.hbm [resolvable:$true] %s17
      %s19 = sshll.u32 [#allocation2], 4
      %s20 = int_to_ptr.vmem [resolvable:$true] %s19
      %25 = dma.hbm_to_vmem [thread:$0]  %s18, 2048, %s20, [#allocation3], 1024, 1024, 64
    $region5: #{tpu_custom_call.1} parent=1 // pred_fallthru
      _
    // Predicated region
    $region6: #{tpu_custom_call.1} parent=1 // pred_check
      _
    $region7: #{tpu_custom_call.1} parent=1 // pred_check_branch
      %27 = sbr.rel (0) target = $region9
    $region8: #{tpu_custom_call.1} parent=1 // pred_region
      %29 = vsyncadd [#allocation6], 0
      %s30 = sshll.u32 %s1, 4
      %s31 = int_to_ptr.hbm [resolvable:$true] %s30
      %s32 = sshll.u32 [#allocation5], 4
      %s33 = int_to_ptr.vmem [resolvable:$true] %s32
      %38 = dma.hbm_to_vmem [thread:$0]  %s31, 16384, %s33, [#allocation6], 64, 64, 4
    $region9: #{tpu_custom_call.1} parent=1 // pred_fallthru
      _
    // Predicated region
    $region10: #{tpu_custom_call.1} parent=1 // pred_check
      _
    $region11: #{tpu_custom_call.1} parent=1 // pred_check_branch
      %40 = sbr.rel (0) target = $region13
    $region12: #{tpu_custom_call.1} parent=1 // pred_region
      _
    $region13: #{tpu_custom_call.1} parent=1 // pred_fallthru
      _
    // Predicated region
    $region14: #{tpu_custom_call.1} parent=1 // pred_check
      _
    $region15: #{tpu_custom_call.1} parent=1 // pred_check_branch
      %42 = sbr.rel (0) target = $region17
    $region16: #{tpu_custom_call.1} parent=1 // pred_region
      %44 = vsyncadd [#allocation6], 0
      %s45 = sshll.u32 %s3, 4
      %s46 = int_to_ptr.hbm [resolvable:$true] %s45
      %s47 = sshll.u32 [#allocation7], 4
      %s48 = int_to_ptr.vmem [resolvable:$true] %s47
      %53 = dma.hbm_to_vmem [thread:$0]  %s46, 2048, %s48, [#allocation6], 128, 128, 8
    $region17: #{tpu_custom_call.1} parent=1 // pred_fallthru
      _
    // Predicated region
    $region18: #{tpu_custom_call.1} parent=1 // pred_check
      _
    $region19: #{tpu_custom_call.1} parent=1 // pred_check_branch
      %55 = sbr.rel (0) target = $region21
    $region20: #{tpu_custom_call.1} parent=1 // pred_region
      _
    $region21: #{tpu_custom_call.1} parent=1 // pred_fallthru
      _
    // Predicated region
    $region22: #{tpu_custom_call.1} parent=1 // pred_check
      _
    $region23: #{tpu_custom_call.1} parent=1 // pred_check_branch
      %57 = sbr.rel (0) target = $region25
    $region24: #{tpu_custom_call.1} parent=1 // pred_region
      %59 = dma.done [#allocation3], 2048
    $region25: #{tpu_custom_call.1} parent=1 // pred_fallthru
      _
    // Predicated region
    $region26: #{tpu_custom_call.1} parent=1 // pred_check
      _
    $region27: #{tpu_custom_call.1} parent=1 // pred_check_branch
      %61 = sbr.rel (0) target = $region29
    $region28: #{tpu_custom_call.1} parent=1 // pred_region
      %63 = dma.done [#allocation6], 16384
    $region29: #{tpu_custom_call.1} parent=1 // pred_fallthru
      _
    // Predicated region
    $region30: #{tpu_custom_call.1} parent=1 // pred_check
      _
    $region31: #{tpu_custom_call.1} parent=1 // pred_check_branch
      %65 = sbr.rel (0) target = $region33
    $region32: #{tpu_custom_call.1} parent=1 // pred_region
      %67 = dma.done [#allocation6], 2048
    $region33: #{tpu_custom_call.1} parent=1 // pred_fallthru
      _
    %v68 = vld [vmem:[#allocation2] sm:$0xff]
    %v69 = vld [vmem:[#allocation2 + $0x8] sm:$0xff]
    %v70 = vld [vmem:[#allocation2 + $0x10] sm:$0xff]
    %v71 = vld [vmem:[#allocation2 + $0x18] sm:$0xff]
    %v72 = vld [vmem:[#allocation2 + $0x20] sm:$0xff]
    %v73 = vld [vmem:[#allocation2 + $0x28] sm:$0xff]
    %v74 = vld [vmem:[#allocation2 + $0x30] sm:$0xff]
    %v75 = vld [vmem:[#allocation2 + $0x38] sm:$0xff]
    %v76 = vld [vmem:[#allocation2 + $0x40] sm:$0xff]
    %v77 = vld [vmem:[#allocation2 + $0x48] sm:$0xff]
    %v78 = vld [vmem:[#allocation2 + $0x50] sm:$0xff]
    %v79 = vld [vmem:[#allocation2 + $0x58] sm:$0xff]
    %v80 = vld [vmem:[#allocation2 + $0x60] sm:$0xff]
    %v81 = vld [vmem:[#allocation2 + $0x68] sm:$0xff]
    %v82 = vld [vmem:[#allocation2 + $0x70] sm:$0xff]
    %v83 = vld [vmem:[#allocation2 + $0x78] sm:$0xff]
    %v84 = vld [vmem:[#allocation5] sm:$0xf]
    %v85 = vld [vmem:[#allocation5 + $0x4] sm:$0xf]
    %v86 = vld [vmem:[#allocation5 + $0x8] sm:$0xf]
    %v87 = vld [vmem:[#allocation5 + $0xc] sm:$0xf]
    %v88 = vld [vmem:[#allocation5 + $0x10] sm:$0xf]
    %v89 = vld [vmem:[#allocation5 + $0x14] sm:$0xf]
    %v90 = vld [vmem:[#allocation5 + $0x18] sm:$0xf]
    %v91 = vld [vmem:[#allocation5 + $0x1c] sm:$0xf]
    %v92 = vld [vmem:[#allocation5 + $0x20] sm:$0xf]
    %v93 = vld [vmem:[#allocation5 + $0x24] sm:$0xf]
    %v94 = vld [vmem:[#allocation5 + $0x28] sm:$0xf]
    %v95 = vld [vmem:[#allocation5 + $0x2c] sm:$0xf]
    %v96 = vld [vmem:[#allocation5 + $0x30] sm:$0xf]
    %v97 = vld [vmem:[#allocation5 + $0x34] sm:$0xf]
    %v98 = vld [vmem:[#allocation5 + $0x38] sm:$0xf]
    %v99 = vld [vmem:[#allocation5 + $0x3c] sm:$0xf]
    %v100 = vld [vmem:[#allocation5 + $0x40] sm:$0xf]
    %v101 = vld [vmem:[#allocation5 + $0x44] sm:$0xf]
    %v102 = vld [vmem:[#allocation5 + $0x48] sm:$0xf]
    %v103 = vld [vmem:[#allocation5 + $0x4c] sm:$0xf]
    %v104 = vld [vmem:[#allocation5 + $0x50] sm:$0xf]
    %v105 = vld [vmem:[#allocation5 + $0x54] sm:$0xf]
    %v106 = vld [vmem:[#allocation5 + $0x58] sm:$0xf]
    %v107 = vld [vmem:[#allocation5 + $0x5c] sm:$0xf]
    %v108 = vld [vmem:[#allocation5 + $0x60] sm:$0xf]
    %v109 = vld [vmem:[#allocation5 + $0x64] sm:$0xf]
    %v110 = vld [vmem:[#allocation5 + $0x68] sm:$0xf]
    %v111 = vld [vmem:[#allocation5 + $0x6c] sm:$0xf]
    %v112 = vld [vmem:[#allocation5 + $0x70] sm:$0xf]
    %v113 = vld [vmem:[#allocation5 + $0x74] sm:$0xf]
    %v114 = vld [vmem:[#allocation5 + $0x78] sm:$0xf]
    %v115 = vld [vmem:[#allocation5 + $0x7c] sm:$0xf]
    %v116 = vld [vmem:[#allocation5 + $0x80] sm:$0xf]
    %v117 = vld [vmem:[#allocation5 + $0x84] sm:$0xf]
    %v118 = vld [vmem:[#allocation5 + $0x88] sm:$0xf]
    %v119 = vld [vmem:[#allocation5 + $0x8c] sm:$0xf]
    %v120 = vld [vmem:[#allocation5 + $0x90] sm:$0xf]
    %v121 = vld [vmem:[#allocation5 + $0x94] sm:$0xf]
    %v122 = vld [vmem:[#allocation5 + $0x98] sm:$0xf]
    %v123 = vld [vmem:[#allocation5 + $0x9c] sm:$0xf]
    %v124 = vld [vmem:[#allocation5 + $0xa0] sm:$0xf]
    %v125 = vld [vmem:[#allocation5 + $0xa4] sm:$0xf]
    %v126 = vld [vmem:[#allocation5 + $0xa8] sm:$0xf]
    %v127 = vld [vmem:[#allocation5 + $0xac] sm:$0xf]
    %v128 = vld [vmem:[#allocation5 + $0xb0] sm:$0xf]
    %v129 = vld [vmem:[#allocation5 + $0xb4] sm:$0xf]
    %v130 = vld [vmem:[#allocation5 + $0xb8] sm:$0xf]
    %v131 = vld [vmem:[#allocation5 + $0xbc] sm:$0xf]
    %v132 = vld [vmem:[#allocation5 + $0xc0] sm:$0xf]
    %v133 = vld [vmem:[#allocation5 + $0xc4] sm:$0xf]
    %v134 = vld [vmem:[#allocation5 + $0xc8] sm:$0xf]
    %v135 = vld [vmem:[#allocation5 + $0xcc] sm:$0xf]
    %v136 = vld [vmem:[#allocation5 + $0xd0] sm:$0xf]
    %v137 = vld [vmem:[#allocation5 + $0xd4] sm:$0xf]
    %v138 = vld [vmem:[#allocation5 + $0xd8] sm:$0xf]
    %v139 = vld [vmem:[#allocation5 + $0xdc] sm:$0xf]
    %v140 = vld [vmem:[#allocation5 + $0xe0] sm:$0xf]
    %v141 = vld [vmem:[#allocation5 + $0xe4] sm:$0xf]
    %v142 = vld [vmem:[#allocation5 + $0xe8] sm:$0xf]
    %v143 = vld [vmem:[#allocation5 + $0xec] sm:$0xf]
    %v144 = vld [vmem:[#allocation5 + $0xf0] sm:$0xf]
    %v145 = vld [vmem:[#allocation5 + $0xf4] sm:$0xf]
    %v146 = vld [vmem:[#allocation5 + $0xf8] sm:$0xf]
    %v147 = vld [vmem:[#allocation5 + $0xfc] sm:$0xf]
    %v148 = vld [vmem:[#allocation5 + $0x100] sm:$0xf]
    %v149 = vld [vmem:[#allocation5 + $0x104] sm:$0xf]
    %v150 = vld [vmem:[#allocation5 + $0x108] sm:$0xf]
    %v151 = vld [vmem:[#allocation5 + $0x10c] sm:$0xf]
    %v152 = vld [vmem:[#allocation5 + $0x110] sm:$0xf]
    %v153 = vld [vmem:[#allocation5 + $0x114] sm:$0xf]
    %v154 = vld [vmem:[#allocation5 + $0x118] sm:$0xf]
    %v155 = vld [vmem:[#allocation5 + $0x11c] sm:$0xf]
    %v156 = vld [vmem:[#allocation5 + $0x120] sm:$0xf]
    %v157 = vld [vmem:[#allocation5 + $0x124] sm:$0xf]
    %v158 = vld [vmem:[#allocation5 + $0x128] sm:$0xf]
    %v159 = vld [vmem:[#allocation5 + $0x12c] sm:$0xf]
    %v160 = vld [vmem:[#allocation5 + $0x130] sm:$0xf]
    %v161 = vld [vmem:[#allocation5 + $0x134] sm:$0xf]
    %v162 = vld [vmem:[#allocation5 + $0x138] sm:$0xf]
    %v163 = vld [vmem:[#allocation5 + $0x13c] sm:$0xf]
    %v164 = vld [vmem:[#allocation5 + $0x140] sm:$0xf]
    %v165 = vld [vmem:[#allocation5 + $0x144] sm:$0xf]
    %v166 = vld [vmem:[#allocation5 + $0x148] sm:$0xf]
    %v167 = vld [vmem:[#allocation5 + $0x14c] sm:$0xf]
    %v168 = vld [vmem:[#allocation5 + $0x150] sm:$0xf]
    %v169 = vld [vmem:[#allocation5 + $0x154] sm:$0xf]
    %v170 = vld [vmem:[#allocation5 + $0x158] sm:$0xf]
    %v171 = vld [vmem:[#allocation5 + $0x15c] sm:$0xf]
    %v172 = vld [vmem:[#allocation5 + $0x160] sm:$0xf]
    %v173 = vld [vmem:[#allocation5 + $0x164] sm:$0xf]
    %v174 = vld [vmem:[#allocation5 + $0x168] sm:$0xf]
    %v175 = vld [vmem:[#allocation5 + $0x16c] sm:$0xf]
    %v176 = vld [vmem:[#allocation5 + $0x170] sm:$0xf]
    %v177 = vld [vmem:[#allocation5 + $0x174] sm:$0xf]
    %v178 = vld [vmem:[#allocation5 + $0x178] sm:$0xf]
    %v179 = vld [vmem:[#allocation5 + $0x17c] sm:$0xf]
    %v180 = vld [vmem:[#allocation5 + $0x180] sm:$0xf]
    %v181 = vld [vmem:[#allocation5 + $0x184] sm:$0xf]
    %v182 = vld [vmem:[#allocation5 + $0x188] sm:$0xf]
    %v183 = vld [vmem:[#allocation5 + $0x18c] sm:$0xf]
    %v184 = vld [vmem:[#allocation5 + $0x190] sm:$0xf]
    %v185 = vld [vmem:[#allocation5 + $0x194] sm:$0xf]
    %v186 = vld [vmem:[#allocation5 + $0x198] sm:$0xf]
    %v187 = vld [vmem:[#allocation5 + $0x19c] sm:$0xf]
    %v188 = vld [vmem:[#allocation5 + $0x1a0] sm:$0xf]
    %v189 = vld [vmem:[#allocation5 + $0x1a4] sm:$0xf]
    %v190 = vld [vmem:[#allocation5 + $0x1a8] sm:$0xf]
    %v191 = vld [vmem:[#allocation5 + $0x1ac] sm:$0xf]
    %v192 = vld [vmem:[#allocation5 + $0x1b0] sm:$0xf]
    %v193 = vld [vmem:[#allocation5 + $0x1b4] sm:$0xf]
    %v194 = vld [vmem:[#allocation5 + $0x1b8] sm:$0xf]
    %v195 = vld [vmem:[#allocation5 + $0x1bc] sm:$0xf]
    %v196 = vld [vmem:[#allocation5 + $0x1c0] sm:$0xf]
    %v197 = vld [vmem:[#allocation5 + $0x1c4] sm:$0xf]
    %v198 = vld [vmem:[#allocation5 + $0x1c8] sm:$0xf]
    %v199 = vld [vmem:[#allocation5 + $0x1cc] sm:$0xf]
    %v200 = vld [vmem:[#allocation5 + $0x1d0] sm:$0xf]
    %v201 = vld [vmem:[#allocation5 + $0x1d4] sm:$0xf]
    %v202 = vld [vmem:[#allocation5 + $0x1d8] sm:$0xf]
    %v203 = vld [vmem:[#allocation5 + $0x1dc] sm:$0xf]
    %v204 = vld [vmem:[#allocation5 + $0x1e0] sm:$0xf]
    %v205 = vld [vmem:[#allocation5 + $0x1e4] sm:$0xf]
    %v206 = vld [vmem:[#allocation5 + $0x1e8] sm:$0xf]
    %v207 = vld [vmem:[#allocation5 + $0x1ec] sm:$0xf]
    %v208 = vld [vmem:[#allocation5 + $0x1f0] sm:$0xf]
    %v209 = vld [vmem:[#allocation5 + $0x1f4] sm:$0xf]
    %v210 = vld [vmem:[#allocation5 + $0x1f8] sm:$0xf]
    %v211 = vld [vmem:[#allocation5 + $0x1fc] sm:$0xf]
    %v212 = vld [vmem:[#allocation5 + $0x200] sm:$0xf]
    %v213 = vld [vmem:[#allocation5 + $0x204] sm:$0xf]
    %v214 = vld [vmem:[#allocation5 + $0x208] sm:$0xf]
    %v215 = vld [vmem:[#allocation5 + $0x20c] sm:$0xf]
    %v216 = vld [vmem:[#allocation5 + $0x210] sm:$0xf]
    %v217 = vld [vmem:[#allocation5 + $0x214] sm:$0xf]
    %v218 = vld [vmem:[#allocation5 + $0x218] sm:$0xf]
    %v219 = vld [vmem:[#allocation5 + $0x21c] sm:$0xf]
    %v220 = vld [vmem:[#allocation5 + $0x220] sm:$0xf]
    %v221 = vld [vmem:[#allocation5 + $0x224] sm:$0xf]
    %v222 = vld [vmem:[#allocation5 + $0x228] sm:$0xf]
    %v223 = vld [vmem:[#allocation5 + $0x22c] sm:$0xf]
    %v224 = vld [vmem:[#allocation5 + $0x230] sm:$0xf]
    %v225 = vld [vmem:[#allocation5 + $0x234] sm:$0xf]
    %v226 = vld [vmem:[#allocation5 + $0x238] sm:$0xf]
    %v227 = vld [vmem:[#allocation5 + $0x23c] sm:$0xf]
    %v228 = vld [vmem:[#allocation5 + $0x240] sm:$0xf]
    %v229 = vld [vmem:[#allocation5 + $0x244] sm:$0xf]
    %v230 = vld [vmem:[#allocation5 + $0x248] sm:$0xf]
    %v231 = vld [vmem:[#allocation5 + $0x24c] sm:$0xf]
    %v232 = vld [vmem:[#allocation5 + $0x250] sm:$0xf]
    %v233 = vld [vmem:[#allocation5 + $0x254] sm:$0xf]
    %v234 = vld [vmem:[#allocation5 + $0x258] sm:$0xf]
    %v235 = vld [vmem:[#allocation5 + $0x25c] sm:$0xf]
    %v236 = vld [vmem:[#allocation5 + $0x260] sm:$0xf]
    %v237 = vld [vmem:[#allocation5 + $0x264] sm:$0xf]
    %v238 = vld [vmem:[#allocation5 + $0x268] sm:$0xf]
    %v239 = vld [vmem:[#allocation5 + $0x26c] sm:$0xf]
    %v240 = vld [vmem:[#allocation5 + $0x270] sm:$0xf]
    %v241 = vld [vmem:[#allocation5 + $0x274] sm:$0xf]
    %v242 = vld [vmem:[#allocation5 + $0x278] sm:$0xf]
    %v243 = vld [vmem:[#allocation5 + $0x27c] sm:$0xf]
    %v244 = vld [vmem:[#allocation5 + $0x280] sm:$0xf]
    %v245 = vld [vmem:[#allocation5 + $0x284] sm:$0xf]
    %v246 = vld [vmem:[#allocation5 + $0x288] sm:$0xf]
    %v247 = vld [vmem:[#allocation5 + $0x28c] sm:$0xf]
    %v248 = vld [vmem:[#allocation5 + $0x290] sm:$0xf]
    %v249 = vld [vmem:[#allocation5 + $0x294] sm:$0xf]
    %v250 = vld [vmem:[#allocation5 + $0x298] sm:$0xf]
    %v251 = vld [vmem:[#allocation5 + $0x29c] sm:$0xf]
    %v252 = vld [vmem:[#allocation5 + $0x2a0] sm:$0xf]
    %v253 = vld [vmem:[#allocation5 + $0x2a4] sm:$0xf]
    %v254 = vld [vmem:[#allocation5 + $0x2a8] sm:$0xf]
    %v255 = vld [vmem:[#allocation5 + $0x2ac] sm:$0xf]
    %v256 = vld [vmem:[#allocation5 + $0x2b0] sm:$0xf]
    %v257 = vld [vmem:[#allocation5 + $0x2b4] sm:$0xf]
    %v258 = vld [vmem:[#allocation5 + $0x2b8] sm:$0xf]
    %v259 = vld [vmem:[#allocation5 + $0x2bc] sm:$0xf]
    %v260 = vld [vmem:[#allocation5 + $0x2c0] sm:$0xf]
    %v261 = vld [vmem:[#allocation5 + $0x2c4] sm:$0xf]
    %v262 = vld [vmem:[#allocation5 + $0x2c8] sm:$0xf]
    %v263 = vld [vmem:[#allocation5 + $0x2cc] sm:$0xf]
    %v264 = vld [vmem:[#allocation5 + $0x2d0] sm:$0xf]
    %v265 = vld [vmem:[#allocation5 + $0x2d4] sm:$0xf]
    %v266 = vld [vmem:[#allocation5 + $0x2d8] sm:$0xf]
    %v267 = vld [vmem:[#allocation5 + $0x2dc] sm:$0xf]
    %v268 = vld [vmem:[#allocation5 + $0x2e0] sm:$0xf]
    %v269 = vld [vmem:[#allocation5 + $0x2e4] sm:$0xf]
    %v270 = vld [vmem:[#allocation5 + $0x2e8] sm:$0xf]
    %v271 = vld [vmem:[#allocation5 + $0x2ec] sm:$0xf]
    %v272 = vld [vmem:[#allocation5 + $0x2f0] sm:$0xf]
    %v273 = vld [vmem:[#allocation5 + $0x2f4] sm:$0xf]
    %v274 = vld [vmem:[#allocation5 + $0x2f8] sm:$0xf]
    %v275 = vld [vmem:[#allocation5 + $0x2fc] sm:$0xf]
    %v276 = vld [vmem:[#allocation5 + $0x300] sm:$0xf]
    %v277 = vld [vmem:[#allocation5 + $0x304] sm:$0xf]
    %v278 = vld [vmem:[#allocation5 + $0x308] sm:$0xf]
    %v279 = vld [vmem:[#allocation5 + $0x30c] sm:$0xf]
    %v280 = vld [vmem:[#allocation5 + $0x310] sm:$0xf]
    %v281 = vld [vmem:[#allocation5 + $0x314] sm:$0xf]
    %v282 = vld [vmem:[#allocation5 + $0x318] sm:$0xf]
    %v283 = vld [vmem:[#allocation5 + $0x31c] sm:$0xf]
    %v284 = vld [vmem:[#allocation5 + $0x320] sm:$0xf]
    %v285 = vld [vmem:[#allocation5 + $0x324] sm:$0xf]
    %v286 = vld [vmem:[#allocation5 + $0x328] sm:$0xf]
    %v287 = vld [vmem:[#allocation5 + $0x32c] sm:$0xf]
    %v288 = vld [vmem:[#allocation5 + $0x330] sm:$0xf]
    %v289 = vld [vmem:[#allocation5 + $0x334] sm:$0xf]
    %v290 = vld [vmem:[#allocation5 + $0x338] sm:$0xf]
    %v291 = vld [vmem:[#allocation5 + $0x33c] sm:$0xf]
    %v292 = vld [vmem:[#allocation5 + $0x340] sm:$0xf]
    %v293 = vld [vmem:[#allocation5 + $0x344] sm:$0xf]
    %v294 = vld [vmem:[#allocation5 + $0x348] sm:$0xf]
    %v295 = vld [vmem:[#allocation5 + $0x34c] sm:$0xf]
    %v296 = vld [vmem:[#allocation5 + $0x350] sm:$0xf]
    %v297 = vld [vmem:[#allocation5 + $0x354] sm:$0xf]
    %v298 = vld [vmem:[#allocation5 + $0x358] sm:$0xf]
    %v299 = vld [vmem:[#allocation5 + $0x35c] sm:$0xf]
    %v300 = vld [vmem:[#allocation5 + $0x360] sm:$0xf]
    %v301 = vld [vmem:[#allocation5 + $0x364] sm:$0xf]
    %v302 = vld [vmem:[#allocation5 + $0x368] sm:$0xf]
    %v303 = vld [vmem:[#allocation5 + $0x36c] sm:$0xf]
    %v304 = vld [vmem:[#allocation5 + $0x370] sm:$0xf]
    %v305 = vld [vmem:[#allocation5 + $0x374] sm:$0xf]
    %v306 = vld [vmem:[#allocation5 + $0x378] sm:$0xf]
    %v307 = vld [vmem:[#allocation5 + $0x37c] sm:$0xf]
    %v308 = vld [vmem:[#allocation5 + $0x380] sm:$0xf]
    %v309 = vld [vmem:[#allocation5 + $0x384] sm:$0xf]
    %v310 = vld [vmem:[#allocation5 + $0x388] sm:$0xf]
    %v311 = vld [vmem:[#allocation5 + $0x38c] sm:$0xf]
    %v312 = vld [vmem:[#allocation5 + $0x390] sm:$0xf]
    %v313 = vld [vmem:[#allocation5 + $0x394] sm:$0xf]
    %v314 = vld [vmem:[#allocation5 + $0x398] sm:$0xf]
    %v315 = vld [vmem:[#allocation5 + $0x39c] sm:$0xf]
    %v316 = vld [vmem:[#allocation5 + $0x3a0] sm:$0xf]
    %v317 = vld [vmem:[#allocation5 + $0x3a4] sm:$0xf]
    %v318 = vld [vmem:[#allocation5 + $0x3a8] sm:$0xf]
    %v319 = vld [vmem:[#allocation5 + $0x3ac] sm:$0xf]
    %v320 = vld [vmem:[#allocation5 + $0x3b0] sm:$0xf]
    %v321 = vld [vmem:[#allocation5 + $0x3b4] sm:$0xf]
    %v322 = vld [vmem:[#allocation5 + $0x3b8] sm:$0xf]
    %v323 = vld [vmem:[#allocation5 + $0x3bc] sm:$0xf]
    %v324 = vld [vmem:[#allocation5 + $0x3c0] sm:$0xf]
    %v325 = vld [vmem:[#allocation5 + $0x3c4] sm:$0xf]
    %v326 = vld [vmem:[#allocation5 + $0x3c8] sm:$0xf]
    %v327 = vld [vmem:[#allocation5 + $0x3cc] sm:$0xf]
    %v328 = vld [vmem:[#allocation5 + $0x3d0] sm:$0xf]
    %v329 = vld [vmem:[#allocation5 + $0x3d4] sm:$0xf]
    %v330 = vld [vmem:[#allocation5 + $0x3d8] sm:$0xf]
    %v331 = vld [vmem:[#allocation5 + $0x3dc] sm:$0xf]
    %v332 = vld [vmem:[#allocation5 + $0x3e0] sm:$0xf]
    %v333 = vld [vmem:[#allocation5 + $0x3e4] sm:$0xf]
    %v334 = vld [vmem:[#allocation5 + $0x3e8] sm:$0xf]
    %v335 = vld [vmem:[#allocation5 + $0x3ec] sm:$0xf]
    %v336 = vld [vmem:[#allocation5 + $0x3f0] sm:$0xf]
    %v337 = vld [vmem:[#allocation5 + $0x3f4] sm:$0xf]
    %v338 = vld [vmem:[#allocation5 + $0x3f8] sm:$0xf]
    %v339 = vld [vmem:[#allocation5 + $0x3fc] sm:$0xf]
    %v340 = vld [vmem:[%s2] sm:$0x1]
    %v342 = vperm.slane %v340, 0
    %v360 = vunpack.c.l.b16 %v68
    %v361 = vunpack.c.h.b16 %v68
    %v362 = vunpack.c.l.b16 %v69
    %v363 = vunpack.c.h.b16 %v69
    %v364 = vunpack.c.l.b16 %v70
    %v365 = vunpack.c.h.b16 %v70
    %v366 = vunpack.c.l.b16 %v71
    %v367 = vunpack.c.h.b16 %v71
    %v368 = vunpack.c.l.b16 %v72
    %v369 = vunpack.c.h.b16 %v72
    %v370 = vunpack.c.l.b16 %v73
    %v371 = vunpack.c.h.b16 %v73
    %v372 = vunpack.c.l.b16 %v74
    %v373 = vunpack.c.h.b16 %v74
    %v374 = vunpack.c.l.b16 %v75
    %v375 = vunpack.c.h.b16 %v75
    %v376 = vunpack.c.l.b16 %v76
    %v377 = vunpack.c.h.b16 %v76
    %v378 = vunpack.c.l.b16 %v77
    %v379 = vunpack.c.h.b16 %v77
    %v380 = vunpack.c.l.b16 %v78
    %v381 = vunpack.c.h.b16 %v78
    %v382 = vunpack.c.l.b16 %v79
    %v383 = vunpack.c.h.b16 %v79
    %v384 = vunpack.c.l.b16 %v80
    %v385 = vunpack.c.h.b16 %v80
    %v386 = vunpack.c.l.b16 %v81
    %v387 = vunpack.c.h.b16 %v81
    %v388 = vunpack.c.l.b16 %v82
    %v389 = vunpack.c.h.b16 %v82
    %v390 = vunpack.c.l.b16 %v83
    %v391 = vunpack.c.h.b16 %v83
    %v392 = vpack.c.b16 %v376, %v360
    %v393 = vpack.c.b16 %v377, %v361
    %v394 = vpack.c.b16 %v378, %v362
    %v395 = vpack.c.b16 %v379, %v363
    %v396 = vpack.c.b16 %v380, %v364
    %v397 = vpack.c.b16 %v381, %v365
    %v398 = vpack.c.b16 %v382, %v366
    %v399 = vpack.c.b16 %v383, %v367
    %v400 = vpack.c.b16 %v384, %v368
    %v401 = vpack.c.b16 %v385, %v369
    %v402 = vpack.c.b16 %v386, %v370
    %v403 = vpack.c.b16 %v387, %v371
    %v404 = vpack.c.b16 %v388, %v372
    %v405 = vpack.c.b16 %v389, %v373
    %v406 = vpack.c.b16 %v390, %v374
    %v407 = vpack.c.b16 %v391, %v375
    %v680 = vunpack.c.l.b16 %v84
    %v681 = vunpack.c.l.b16 %v85
    %v682 = vunpack.c.l.b16 %v86
    %v683 = vunpack.c.l.b16 %v87
    %v684 = vunpack.c.l.b16 %v88
    %v685 = vunpack.c.l.b16 %v89
    %v686 = vunpack.c.l.b16 %v90
    %v687 = vunpack.c.l.b16 %v91
    %v688 = vunpack.c.l.b16 %v92
    %v689 = vunpack.c.l.b16 %v93
    %v690 = vunpack.c.l.b16 %v94
    %v691 = vunpack.c.l.b16 %v95
    %v692 = vunpack.c.l.b16 %v96
    %v693 = vunpack.c.l.b16 %v97
    %v694 = vunpack.c.l.b16 %v98
    %v695 = vunpack.c.l.b16 %v99
    %v696 = vunpack.c.l.b16 %v100
    %v697 = vunpack.c.l.b16 %v101
    %v698 = vunpack.c.l.b16 %v102
    %v699 = vunpack.c.l.b16 %v103
    %v700 = vunpack.c.l.b16 %v104
    %v701 = vunpack.c.l.b16 %v105
    %v702 = vunpack.c.l.b16 %v106
    %v703 = vunpack.c.l.b16 %v107
    %v704 = vunpack.c.l.b16 %v108
    %v705 = vunpack.c.l.b16 %v109
    %v706 = vunpack.c.l.b16 %v110
    %v707 = vunpack.c.l.b16 %v111
    %v708 = vunpack.c.l.b16 %v112
    %v709 = vunpack.c.l.b16 %v113
    %v710 = vunpack.c.l.b16 %v114
    %v711 = vunpack.c.l.b16 %v115
    %v712 = vunpack.c.l.b16 %v116
    %v713 = vunpack.c.l.b16 %v117
    %v714 = vunpack.c.l.b16 %v118
    %v715 = vunpack.c.l.b16 %v119
    %v716 = vunpack.c.l.b16 %v120
    %v717 = vunpack.c.l.b16 %v121
    %v718 = vunpack.c.l.b16 %v122
    %v719 = vunpack.c.l.b16 %v123
    %v720 = vunpack.c.l.b16 %v124
    %v721 = vunpack.c.l.b16 %v125
    %v722 = vunpack.c.l.b16 %v126
    %v723 = vunpack.c.l.b16 %v127
    %v724 = vunpack.c.l.b16 %v128
    %v725 = vunpack.c.l.b16 %v129
    %v726 = vunpack.c.l.b16 %v130
    %v727 = vunpack.c.l.b16 %v131
    %v728 = vunpack.c.l.b16 %v132
    %v729 = vunpack.c.l.b16 %v133
    %v730 = vunpack.c.l.b16 %v134
    %v731 = vunpack.c.l.b16 %v135
    %v732 = vunpack.c.l.b16 %v136
    %v733 = vunpack.c.l.b16 %v137
    %v734 = vunpack.c.l.b16 %v138
    %v735 = vunpack.c.l.b16 %v139
    %v736 = vunpack.c.l.b16 %v140
    %v737 = vunpack.c.l.b16 %v141
    %v738 = vunpack.c.l.b16 %v142
    %v739 = vunpack.c.l.b16 %v143
    %v740 = vunpack.c.l.b16 %v144
    %v741 = vunpack.c.l.b16 %v145
    %v742 = vunpack.c.l.b16 %v146
    %v743 = vunpack.c.l.b16 %v147
    %v744 = vunpack.c.l.b16 %v148
    %v745 = vunpack.c.l.b16 %v149
    %v746 = vunpack.c.l.b16 %v150
    %v747 = vunpack.c.l.b16 %v151
    %v748 = vunpack.c.l.b16 %v152
    %v749 = vunpack.c.l.b16 %v153
    %v750 = vunpack.c.l.b16 %v154
    %v751 = vunpack.c.l.b16 %v155
    %v752 = vunpack.c.l.b16 %v156
    %v753 = vunpack.c.l.b16 %v157
    %v754 = vunpack.c.l.b16 %v158
    %v755 = vunpack.c.l.b16 %v159
    %v756 = vunpack.c.l.b16 %v160
    %v757 = vunpack.c.l.b16 %v161
    %v758 = vunpack.c.l.b16 %v162
    %v759 = vunpack.c.l.b16 %v163
    %v760 = vunpack.c.l.b16 %v164
    %v761 = vunpack.c.l.b16 %v165
    %v762 = vunpack.c.l.b16 %v166
    %v763 = vunpack.c.l.b16 %v167
    %v764 = vunpack.c.l.b16 %v168
    %v765 = vunpack.c.l.b16 %v169
    %v766 = vunpack.c.l.b16 %v170
    %v767 = vunpack.c.l.b16 %v171
    %v768 = vunpack.c.l.b16 %v172
    %v769 = vunpack.c.l.b16 %v173
    %v770 = vunpack.c.l.b16 %v174
    %v771 = vunpack.c.l.b16 %v175
    %v772 = vunpack.c.l.b16 %v176
    %v773 = vunpack.c.l.b16 %v177
    %v774 = vunpack.c.l.b16 %v178
    %v775 = vunpack.c.l.b16 %v179
    %v776 = vunpack.c.l.b16 %v180
    %v777 = vunpack.c.l.b16 %v181
    %v778 = vunpack.c.l.b16 %v182
    %v779 = vunpack.c.l.b16 %v183
    %v780 = vunpack.c.l.b16 %v184
    %v781 = vunpack.c.l.b16 %v185
    %v782 = vunpack.c.l.b16 %v186
    %v783 = vunpack.c.l.b16 %v187
    %v784 = vunpack.c.l.b16 %v188
    %v785 = vunpack.c.l.b16 %v189
    %v786 = vunpack.c.l.b16 %v190
    %v787 = vunpack.c.l.b16 %v191
    %v788 = vunpack.c.l.b16 %v192
    %v789 = vunpack.c.l.b16 %v193
    %v790 = vunpack.c.l.b16 %v194
    %v791 = vunpack.c.l.b16 %v195
    %v792 = vunpack.c.l.b16 %v196
    %v793 = vunpack.c.l.b16 %v197
    %v794 = vunpack.c.l.b16 %v198
    %v795 = vunpack.c.l.b16 %v199
    %v796 = vunpack.c.l.b16 %v200
    %v797 = vunpack.c.l.b16 %v201
    %v798 = vunpack.c.l.b16 %v202
    %v799 = vunpack.c.l.b16 %v203
    %v800 = vunpack.c.l.b16 %v204
    %v801 = vunpack.c.l.b16 %v205
    %v802 = vunpack.c.l.b16 %v206
    %v803 = vunpack.c.l.b16 %v207
    %v804 = vunpack.c.l.b16 %v208
    %v805 = vunpack.c.l.b16 %v209
    %v806 = vunpack.c.l.b16 %v210
    %v807 = vunpack.c.l.b16 %v211
    %v808 = vunpack.c.l.b16 %v212
    %v809 = vunpack.c.l.b16 %v213
    %v810 = vunpack.c.l.b16 %v214
    %v811 = vunpack.c.l.b16 %v215
    %v812 = vunpack.c.l.b16 %v216
    %v813 = vunpack.c.l.b16 %v217
    %v814 = vunpack.c.l.b16 %v218
    %v815 = vunpack.c.l.b16 %v219
    %v816 = vunpack.c.l.b16 %v220
    %v817 = vunpack.c.l.b16 %v221
    %v818 = vunpack.c.l.b16 %v222
    %v819 = vunpack.c.l.b16 %v223
    %v820 = vunpack.c.l.b16 %v224
    %v821 = vunpack.c.l.b16 %v225
    %v822 = vunpack.c.l.b16 %v226
    %v823 = vunpack.c.l.b16 %v227
    %v824 = vunpack.c.l.b16 %v228
    %v825 = vunpack.c.l.b16 %v229
    %v826 = vunpack.c.l.b16 %v230
    %v827 = vunpack.c.l.b16 %v231
    %v828 = vunpack.c.l.b16 %v232
    %v829 = vunpack.c.l.b16 %v233
    %v830 = vunpack.c.l.b16 %v234
    %v831 = vunpack.c.l.b16 %v235
    %v832 = vunpack.c.l.b16 %v236
    %v833 = vunpack.c.l.b16 %v237
    %v834 = vunpack.c.l.b16 %v238
    %v835 = vunpack.c.l.b16 %v239
    %v836 = vunpack.c.l.b16 %v240
    %v837 = vunpack.c.l.b16 %v241
    %v838 = vunpack.c.l.b16 %v242
    %v839 = vunpack.c.l.b16 %v243
    %v840 = vunpack.c.l.b16 %v244
    %v841 = vunpack.c.l.b16 %v245
    %v842 = vunpack.c.l.b16 %v246
    %v843 = vunpack.c.l.b16 %v247
    %v844 = vunpack.c.l.b16 %v248
    %v845 = vunpack.c.l.b16 %v249
    %v846 = vunpack.c.l.b16 %v250
    %v847 = vunpack.c.l.b16 %v251
    %v848 = vunpack.c.l.b16 %v252
    %v849 = vunpack.c.l.b16 %v253
    %v850 = vunpack.c.l.b16 %v254
    %v851 = vunpack.c.l.b16 %v255
    %v852 = vunpack.c.l.b16 %v256
    %v853 = vunpack.c.l.b16 %v257
    %v854 = vunpack.c.l.b16 %v258
    %v855 = vunpack.c.l.b16 %v259
    %v856 = vunpack.c.l.b16 %v260
    %v857 = vunpack.c.l.b16 %v261
    %v858 = vunpack.c.l.b16 %v262
    %v859 = vunpack.c.l.b16 %v263
    %v860 = vunpack.c.l.b16 %v264
    %v861 = vunpack.c.l.b16 %v265
    %v862 = vunpack.c.l.b16 %v266
    %v863 = vunpack.c.l.b16 %v267
    %v864 = vunpack.c.l.b16 %v268
    %v865 = vunpack.c.l.b16 %v269
    %v866 = vunpack.c.l.b16 %v270
    %v867 = vunpack.c.l.b16 %v271
    %v868 = vunpack.c.l.b16 %v272
    %v869 = vunpack.c.l.b16 %v273
    %v870 = vunpack.c.l.b16 %v274
    %v871 = vunpack.c.l.b16 %v275
    %v872 = vunpack.c.l.b16 %v276
    %v873 = vunpack.c.l.b16 %v277
    %v874 = vunpack.c.l.b16 %v278
    %v875 = vunpack.c.l.b16 %v279
    %v876 = vunpack.c.l.b16 %v280
    %v877 = vunpack.c.l.b16 %v281
    %v878 = vunpack.c.l.b16 %v282
    %v879 = vunpack.c.l.b16 %v283
    %v880 = vunpack.c.l.b16 %v284
    %v881 = vunpack.c.l.b16 %v285
    %v882 = vunpack.c.l.b16 %v286
    %v883 = vunpack.c.l.b16 %v287
    %v884 = vunpack.c.l.b16 %v288
    %v885 = vunpack.c.l.b16 %v289
    %v886 = vunpack.c.l.b16 %v290
    %v887 = vunpack.c.l.b16 %v291
    %v888 = vunpack.c.l.b16 %v292
    %v889 = vunpack.c.l.b16 %v293
    %v890 = vunpack.c.l.b16 %v294
    %v891 = vunpack.c.l.b16 %v295
    %v892 = vunpack.c.l.b16 %v296
    %v893 = vunpack.c.l.b16 %v297
    %v894 = vunpack.c.l.b16 %v298
    %v895 = vunpack.c.l.b16 %v299
    %v896 = vunpack.c.l.b16 %v300
    %v897 = vunpack.c.l.b16 %v301
    %v898 = vunpack.c.l.b16 %v302
    %v899 = vunpack.c.l.b16 %v303
    %v900 = vunpack.c.l.b16 %v304
    %v901 = vunpack.c.l.b16 %v305
    %v902 = vunpack.c.l.b16 %v306
    %v903 = vunpack.c.l.b16 %v307
    %v904 = vunpack.c.l.b16 %v308
    %v905 = vunpack.c.l.b16 %v309
    %v906 = vunpack.c.l.b16 %v310
    %v907 = vunpack.c.l.b16 %v311
    %v908 = vunpack.c.l.b16 %v312
    %v909 = vunpack.c.l.b16 %v313
    %v910 = vunpack.c.l.b16 %v314
    %v911 = vunpack.c.l.b16 %v315
    %v912 = vunpack.c.l.b16 %v316
    %v913 = vunpack.c.l.b16 %v317
    %v914 = vunpack.c.l.b16 %v318
    %v915 = vunpack.c.l.b16 %v319
    %v916 = vunpack.c.l.b16 %v320
    %v917 = vunpack.c.l.b16 %v321
    %v918 = vunpack.c.l.b16 %v322
    %v919 = vunpack.c.l.b16 %v323
    %v920 = vunpack.c.l.b16 %v324
    %v921 = vunpack.c.l.b16 %v325
    %v922 = vunpack.c.l.b16 %v326
    %v923 = vunpack.c.l.b16 %v327
    %v924 = vunpack.c.l.b16 %v328
    %v925 = vunpack.c.l.b16 %v329
    %v926 = vunpack.c.l.b16 %v330
    %v927 = vunpack.c.l.b16 %v331
    %v928 = vunpack.c.l.b16 %v332
    %v929 = vunpack.c.l.b16 %v333
    %v930 = vunpack.c.l.b16 %v334
    %v931 = vunpack.c.l.b16 %v335
    %v932 = vunpack.c.l.b16 %v336
    %v933 = vunpack.c.l.b16 %v337
    %v934 = vunpack.c.l.b16 %v338
    %v935 = vunpack.c.l.b16 %v339
    %v936 = vpack.c.b16 %v681, %v680
    %v937 = vpack.c.b16 %v683, %v682
    %v938 = vpack.c.b16 %v685, %v684
    %v939 = vpack.c.b16 %v687, %v686
    %v940 = vpack.c.b16 %v689, %v688
    %v941 = vpack.c.b16 %v691, %v690
    %v942 = vpack.c.b16 %v693, %v692
    %v943 = vpack.c.b16 %v695, %v694
    %v944 = vpack.c.b16 %v697, %v696
    %v945 = vpack.c.b16 %v699, %v698
    %v946 = vpack.c.b16 %v701, %v700
    %v947 = vpack.c.b16 %v703, %v702
    %v948 = vpack.c.b16 %v705, %v704
    %v949 = vpack.c.b16 %v707, %v706
    %v950 = vpack.c.b16 %v709, %v708
    %v951 = vpack.c.b16 %v711, %v710
    %v952 = vpack.c.b16 %v713, %v712
    %v953 = vpack.c.b16 %v715, %v714
    %v954 = vpack.c.b16 %v717, %v716
    %v955 = vpack.c.b16 %v719, %v718
    %v956 = vpack.c.b16 %v721, %v720
    %v957 = vpack.c.b16 %v723, %v722
    %v958 = vpack.c.b16 %v725, %v724
    %v959 = vpack.c.b16 %v727, %v726
    %v960 = vpack.c.b16 %v729, %v728
    %v961 = vpack.c.b16 %v731, %v730
    %v962 = vpack.c.b16 %v733, %v732
    %v963 = vpack.c.b16 %v735, %v734
    %v964 = vpack.c.b16 %v737, %v736
    %v965 = vpack.c.b16 %v739, %v738
    %v966 = vpack.c.b16 %v741, %v740
    %v967 = vpack.c.b16 %v743, %v742
    %v968 = vpack.c.b16 %v745, %v744
    %v969 = vpack.c.b16 %v747, %v746
    %v970 = vpack.c.b16 %v749, %v748
    %v971 = vpack.c.b16 %v751, %v750
    %v972 = vpack.c.b16 %v753, %v752
    %v973 = vpack.c.b16 %v755, %v754
    %v974 = vpack.c.b16 %v757, %v756
    %v975 = vpack.c.b16 %v759, %v758
    %v976 = vpack.c.b16 %v761, %v760
    %v977 = vpack.c.b16 %v763, %v762
    %v978 = vpack.c.b16 %v765, %v764
    %v979 = vpack.c.b16 %v767, %v766
    %v980 = vpack.c.b16 %v769, %v768
    %v981 = vpack.c.b16 %v771, %v770
    %v982 = vpack.c.b16 %v773, %v772
    %v983 = vpack.c.b16 %v775, %v774
    %v984 = vpack.c.b16 %v777, %v776
    %v985 = vpack.c.b16 %v779, %v778
    %v986 = vpack.c.b16 %v781, %v780
    %v987 = vpack.c.b16 %v783, %v782
    %v988 = vpack.c.b16 %v785, %v784
    %v989 = vpack.c.b16 %v787, %v786
    %v990 = vpack.c.b16 %v789, %v788
    %v991 = vpack.c.b16 %v791, %v790
    %v992 = vpack.c.b16 %v793, %v792
    %v993 = vpack.c.b16 %v795, %v794
    %v994 = vpack.c.b16 %v797, %v796
    %v995 = vpack.c.b16 %v799, %v798
    %v996 = vpack.c.b16 %v801, %v800
    %v997 = vpack.c.b16 %v803, %v802
    %v998 = vpack.c.b16 %v805, %v804
    %v999 = vpack.c.b16 %v807, %v806
    %v1000 = vpack.c.b16 %v809, %v808
    %v1001 = vpack.c.b16 %v811, %v810
    %v1002 = vpack.c.b16 %v813, %v812
    %v1003 = vpack.c.b16 %v815, %v814
    %v1004 = vpack.c.b16 %v817, %v816
    %v1005 = vpack.c.b16 %v819, %v818
    %v1006 = vpack.c.b16 %v821, %v820
    %v1007 = vpack.c.b16 %v823, %v822
    %v1008 = vpack.c.b16 %v825, %v824
    %v1009 = vpack.c.b16 %v827, %v826
    %v1010 = vpack.c.b16 %v829, %v828
    %v1011 = vpack.c.b16 %v831, %v830
    %v1012 = vpack.c.b16 %v833, %v832
    %v1013 = vpack.c.b16 %v835, %v834
    %v1014 = vpack.c.b16 %v837, %v836
    %v1015 = vpack.c.b16 %v839, %v838
    %v1016 = vpack.c.b16 %v841, %v840
    %v1017 = vpack.c.b16 %v843, %v842
    %v1018 = vpack.c.b16 %v845, %v844
    %v1019 = vpack.c.b16 %v847, %v846
    %v1020 = vpack.c.b16 %v849, %v848
    %v1021 = vpack.c.b16 %v851, %v850
    %v1022 = vpack.c.b16 %v853, %v852
    %v1023 = vpack.c.b16 %v855, %v854
    %v1024 = vpack.c.b16 %v857, %v856
    %v1025 = vpack.c.b16 %v859, %v858
    %v1026 = vpack.c.b16 %v861, %v860
    %v1027 = vpack.c.b16 %v863, %v862
    %v1028 = vpack.c.b16 %v865, %v864
    %v1029 = vpack.c.b16 %v867, %v866
    %v1030 = vpack.c.b16 %v869, %v868
    %v1031 = vpack.c.b16 %v871, %v870
    %v1032 = vpack.c.b16 %v873, %v872
    %v1033 = vpack.c.b16 %v875, %v874
    %v1034 = vpack.c.b16 %v877, %v876
    %v1035 = vpack.c.b16 %v879, %v878
    %v1036 = vpack.c.b16 %v881, %v880
    %v1037 = vpack.c.b16 %v883, %v882
    %v1038 = vpack.c.b16 %v885, %v884
    %v1039 = vpack.c.b16 %v887, %v886
    %v1040 = vpack.c.b16 %v889, %v888
    %v1041 = vpack.c.b16 %v891, %v890
    %v1042 = vpack.c.b16 %v893, %v892
    %v1043 = vpack.c.b16 %v895, %v894
    %v1044 = vpack.c.b16 %v897, %v896
    %v1045 = vpack.c.b16 %v899, %v898
    %v1046 = vpack.c.b16 %v901, %v900
    %v1047 = vpack.c.b16 %v903, %v902
    %v1048 = vpack.c.b16 %v905, %v904
    %v1049 = vpack.c.b16 %v907, %v906
    %v1050 = vpack.c.b16 %v909, %v908
    %v1051 = vpack.c.b16 %v911, %v910
    %v1052 = vpack.c.b16 %v913, %v912
    %v1053 = vpack.c.b16 %v915, %v914
    %v1054 = vpack.c.b16 %v917, %v916
    %v1055 = vpack.c.b16 %v919, %v918
    %v1056 = vpack.c.b16 %v921, %v920
    %v1057 = vpack.c.b16 %v923, %v922
    %v1058 = vpack.c.b16 %v925, %v924
    %v1059 = vpack.c.b16 %v927, %v926
    %v1060 = vpack.c.b16 %v929, %v928
    %v1061 = vpack.c.b16 %v931, %v930
    %v1062 = vpack.c.b16 %v933, %v932
    %v1063 = vpack.c.b16 %v935, %v934
    %1192 = vmatpush.bf16.msra.mxu0 %v943
    %1193 = vmatpush.bf16.msra.mxu0 %v942
    %1194 = vmatpush.bf16.msra.mxu0 %v941
    %1195 = vmatpush.bf16.msra.mxu0 %v940
    %1196 = vmatpush.bf16.msra.mxu0 %v939
    %1197 = vmatpush.bf16.msra.mxu0 %v938
    %1198 = vmatpush.bf16.msra.mxu0 %v937
    %1199 = vmatpush.bf16.msra.mxu0 %v936
    %1200 = vmatmul.bf16.gmra.mxu0 %v392
    %v1201 = vpop.f32.mrf.mxu0
    %v1202 = vadd.f32 %v342, %v1201
    %v1203 = vpop.f32.mrf.mxu0
    %v1204 = vadd.f32 %v342, %v1203
    %1205 = vdwg.mxu0
    %1206 = vmatpush.bf16.msra.mxu0 %v951
    %1207 = vmatpush.bf16.msra.mxu0 %v950
    %1208 = vmatpush.bf16.msra.mxu0 %v949
    %1209 = vmatpush.bf16.msra.mxu0 %v948
    %1210 = vmatpush.bf16.msra.mxu0 %v947
    %1211 = vmatpush.bf16.msra.mxu0 %v946
    %1212 = vmatpush.bf16.msra.mxu0 %v945
    %1213 = vmatpush.bf16.msra.mxu0 %v944
    %1214 = vmatmul.bf16.gmra.mxu0 %v393
    %v1215 = vpop.f32.mrf.mxu0
    %v1216 = vadd.f32 %v1202, %v1215
    %v1217 = vpop.f32.mrf.mxu0
    %v1218 = vadd.f32 %v1204, %v1217
    %1219 = vdwg.mxu0
    %1220 = vmatpush.bf16.msra.mxu0 %v959
    %1221 = vmatpush.bf16.msra.mxu0 %v958
    %1222 = vmatpush.bf16.msra.mxu0 %v957
    %1223 = vmatpush.bf16.msra.mxu0 %v956
    %1224 = vmatpush.bf16.msra.mxu0 %v955
    %1225 = vmatpush.bf16.msra.mxu0 %v954
    %1226 = vmatpush.bf16.msra.mxu0 %v953
    %1227 = vmatpush.bf16.msra.mxu0 %v952
    %1228 = vmatmul.bf16.gmra.mxu0 %v394
    %v1229 = vpop.f32.mrf.mxu0
    %v1230 = vadd.f32 %v1216, %v1229
    %v1231 = vpop.f32.mrf.mxu0
    %v1232 = vadd.f32 %v1218, %v1231
    %1233 = vdwg.mxu0
    %1234 = vmatpush.bf16.msra.mxu0 %v967
    %1235 = vmatpush.bf16.msra.mxu0 %v966
    %1236 = vmatpush.bf16.msra.mxu0 %v965
    %1237 = vmatpush.bf16.msra.mxu0 %v964
    %1238 = vmatpush.bf16.msra.mxu0 %v963
    %1239 = vmatpush.bf16.msra.mxu0 %v962
    %1240 = vmatpush.bf16.msra.mxu0 %v961
    %1241 = vmatpush.bf16.msra.mxu0 %v960
    %1242 = vmatmul.bf16.gmra.mxu0 %v395
    %v1243 = vpop.f32.mrf.mxu0
    %v1244 = vadd.f32 %v1230, %v1243
    %v1245 = vpop.f32.mrf.mxu0
    %v1246 = vadd.f32 %v1232, %v1245
    %1247 = vdwg.mxu0
    %1248 = vmatpush.bf16.msra.mxu0 %v975
    %1249 = vmatpush.bf16.msra.mxu0 %v974
    %1250 = vmatpush.bf16.msra.mxu0 %v973
    %1251 = vmatpush.bf16.msra.mxu0 %v972
    %1252 = vmatpush.bf16.msra.mxu0 %v971
    %1253 = vmatpush.bf16.msra.mxu0 %v970
    %1254 = vmatpush.bf16.msra.mxu0 %v969
    %1255 = vmatpush.bf16.msra.mxu0 %v968
    %1256 = vmatmul.bf16.gmra.mxu0 %v396
    %v1257 = vpop.f32.mrf.mxu0
    %v1258 = vadd.f32 %v1244, %v1257
    %v1259 = vpop.f32.mrf.mxu0
    %v1260 = vadd.f32 %v1246, %v1259
    %1261 = vdwg.mxu0
    %1262 = vmatpush.bf16.msra.mxu0 %v983
    %1263 = vmatpush.bf16.msra.mxu0 %v982
    %1264 = vmatpush.bf16.msra.mxu0 %v981
    %1265 = vmatpush.bf16.msra.mxu0 %v980
    %1266 = vmatpush.bf16.msra.mxu0 %v979
    %1267 = vmatpush.bf16.msra.mxu0 %v978
    %1268 = vmatpush.bf16.msra.mxu0 %v977
    %1269 = vmatpush.bf16.msra.mxu0 %v976
    %1270 = vmatmul.bf16.gmra.mxu0 %v397
    %v1271 = vpop.f32.mrf.mxu0
    %v1272 = vadd.f32 %v1258, %v1271
    %v1273 = vpop.f32.mrf.mxu0
    %v1274 = vadd.f32 %v1260, %v1273
    %1275 = vdwg.mxu0
    %1276 = vmatpush.bf16.msra.mxu0 %v991
    %1277 = vmatpush.bf16.msra.mxu0 %v990
    %1278 = vmatpush.bf16.msra.mxu0 %v989
    %1279 = vmatpush.bf16.msra.mxu0 %v988
    %1280 = vmatpush.bf16.msra.mxu0 %v987
    %1281 = vmatpush.bf16.msra.mxu0 %v986
    %1282 = vmatpush.bf16.msra.mxu0 %v985
    %1283 = vmatpush.bf16.msra.mxu0 %v984
    %1284 = vmatmul.bf16.gmra.mxu0 %v398
    %v1285 = vpop.f32.mrf.mxu0
    %v1286 = vadd.f32 %v1272, %v1285
    %v1287 = vpop.f32.mrf.mxu0
    %v1288 = vadd.f32 %v1274, %v1287
    %1289 = vdwg.mxu0
    %1290 = vmatpush.bf16.msra.mxu0 %v999
    %1291 = vmatpush.bf16.msra.mxu0 %v998
    %1292 = vmatpush.bf16.msra.mxu0 %v997
    %1293 = vmatpush.bf16.msra.mxu0 %v996
    %1294 = vmatpush.bf16.msra.mxu0 %v995
    %1295 = vmatpush.bf16.msra.mxu0 %v994
    %1296 = vmatpush.bf16.msra.mxu0 %v993
    %1297 = vmatpush.bf16.msra.mxu0 %v992
    %1298 = vmatmul.bf16.gmra.mxu0 %v399
    %v1299 = vpop.f32.mrf.mxu0
    %v1300 = vadd.f32 %v1286, %v1299
    %v1301 = vpop.f32.mrf.mxu0
    %v1302 = vadd.f32 %v1288, %v1301
    %1303 = vdwg.mxu0
    %1304 = vmatpush.bf16.msra.mxu0 %v1007
    %1305 = vmatpush.bf16.msra.mxu0 %v1006
    %1306 = vmatpush.bf16.msra.mxu0 %v1005
    %1307 = vmatpush.bf16.msra.mxu0 %v1004
    %1308 = vmatpush.bf16.msra.mxu0 %v1003
    %1309 = vmatpush.bf16.msra.mxu0 %v1002
    %1310 = vmatpush.bf16.msra.mxu0 %v1001
    %1311 = vmatpush.bf16.msra.mxu0 %v1000
    %1312 = vmatmul.bf16.gmra.mxu0 %v400
    %v1313 = vpop.f32.mrf.mxu0
    %v1314 = vadd.f32 %v1300, %v1313
    %v1315 = vpop.f32.mrf.mxu0
    %v1316 = vadd.f32 %v1302, %v1315
    %1317 = vdwg.mxu0
    %1318 = vmatpush.bf16.msra.mxu0 %v1015
    %1319 = vmatpush.bf16.msra.mxu0 %v1014
    %1320 = vmatpush.bf16.msra.mxu0 %v1013
    %1321 = vmatpush.bf16.msra.mxu0 %v1012
    %1322 = vmatpush.bf16.msra.mxu0 %v1011
    %1323 = vmatpush.bf16.msra.mxu0 %v1010
    %1324 = vmatpush.bf16.msra.mxu0 %v1009
    %1325 = vmatpush.bf16.msra.mxu0 %v1008
    %1326 = vmatmul.bf16.gmra.mxu0 %v401
    %v1327 = vpop.f32.mrf.mxu0
    %v1328 = vadd.f32 %v1314, %v1327
    %v1329 = vpop.f32.mrf.mxu0
    %v1330 = vadd.f32 %v1316, %v1329
    %1331 = vdwg.mxu0
    %1332 = vmatpush.bf16.msra.mxu0 %v1023
    %1333 = vmatpush.bf16.msra.mxu0 %v1022
    %1334 = vmatpush.bf16.msra.mxu0 %v1021
    %1335 = vmatpush.bf16.msra.mxu0 %v1020
    %1336 = vmatpush.bf16.msra.mxu0 %v1019
    %1337 = vmatpush.bf16.msra.mxu0 %v1018
    %1338 = vmatpush.bf16.msra.mxu0 %v1017
    %1339 = vmatpush.bf16.msra.mxu0 %v1016
    %1340 = vmatmul.bf16.gmra.mxu0 %v402
    %v1341 = vpop.f32.mrf.mxu0
    %v1342 = vadd.f32 %v1328, %v1341
    %v1343 = vpop.f32.mrf.mxu0
    %v1344 = vadd.f32 %v1330, %v1343
    %1345 = vdwg.mxu0
    %1346 = vmatpush.bf16.msra.mxu0 %v1031
    %1347 = vmatpush.bf16.msra.mxu0 %v1030
    %1348 = vmatpush.bf16.msra.mxu0 %v1029
    %1349 = vmatpush.bf16.msra.mxu0 %v1028
    %1350 = vmatpush.bf16.msra.mxu0 %v1027
    %1351 = vmatpush.bf16.msra.mxu0 %v1026
    %1352 = vmatpush.bf16.msra.mxu0 %v1025
    %1353 = vmatpush.bf16.msra.mxu0 %v1024
    %1354 = vmatmul.bf16.gmra.mxu0 %v403
    %v1355 = vpop.f32.mrf.mxu0
    %v1356 = vadd.f32 %v1342, %v1355
    %v1357 = vpop.f32.mrf.mxu0
    %v1358 = vadd.f32 %v1344, %v1357
    %1359 = vdwg.mxu0
    %1360 = vmatpush.bf16.msra.mxu0 %v1039
    %1361 = vmatpush.bf16.msra.mxu0 %v1038
    %1362 = vmatpush.bf16.msra.mxu0 %v1037
    %1363 = vmatpush.bf16.msra.mxu0 %v1036
    %1364 = vmatpush.bf16.msra.mxu0 %v1035
    %1365 = vmatpush.bf16.msra.mxu0 %v1034
    %1366 = vmatpush.bf16.msra.mxu0 %v1033
    %1367 = vmatpush.bf16.msra.mxu0 %v1032
    %1368 = vmatmul.bf16.gmra.mxu0 %v404
    %v1369 = vpop.f32.mrf.mxu0
    %v1370 = vadd.f32 %v1356, %v1369
    %v1371 = vpop.f32.mrf.mxu0
    %v1372 = vadd.f32 %v1358, %v1371
    %1373 = vdwg.mxu0
    %1374 = vmatpush.bf16.msra.mxu0 %v1047
    %1375 = vmatpush.bf16.msra.mxu0 %v1046
    %1376 = vmatpush.bf16.msra.mxu0 %v1045
    %1377 = vmatpush.bf16.msra.mxu0 %v1044
    %1378 = vmatpush.bf16.msra.mxu0 %v1043
    %1379 = vmatpush.bf16.msra.mxu0 %v1042
    %1380 = vmatpush.bf16.msra.mxu0 %v1041
    %1381 = vmatpush.bf16.msra.mxu0 %v1040
    %1382 = vmatmul.bf16.gmra.mxu0 %v405
    %v1383 = vpop.f32.mrf.mxu0
    %v1384 = vadd.f32 %v1370, %v1383
    %v1385 = vpop.f32.mrf.mxu0
    %v1386 = vadd.f32 %v1372, %v1385
    %1387 = vdwg.mxu0
    %1388 = vmatpush.bf16.msra.mxu0 %v1055
    %1389 = vmatpush.bf16.msra.mxu0 %v1054
    %1390 = vmatpush.bf16.msra.mxu0 %v1053
    %1391 = vmatpush.bf16.msra.mxu0 %v1052
    %1392 = vmatpush.bf16.msra.mxu0 %v1051
    %1393 = vmatpush.bf16.msra.mxu0 %v1050
    %1394 = vmatpush.bf16.msra.mxu0 %v1049
    %1395 = vmatpush.bf16.msra.mxu0 %v1048
    %1396 = vmatmul.bf16.gmra.mxu0 %v406
    %v1397 = vpop.f32.mrf.mxu0
    %v1398 = vadd.f32 %v1384, %v1397
    %v1399 = vpop.f32.mrf.mxu0
    %v1400 = vadd.f32 %v1386, %v1399
    %1401 = vdwg.mxu0
    %1402 = vmatpush.bf16.msra.mxu0 %v1063
    %1403 = vmatpush.bf16.msra.mxu0 %v1062
    %1404 = vmatpush.bf16.msra.mxu0 %v1061
    %1405 = vmatpush.bf16.msra.mxu0 %v1060
    %1406 = vmatpush.bf16.msra.mxu0 %v1059
    %1407 = vmatpush.bf16.msra.mxu0 %v1058
    %1408 = vmatpush.bf16.msra.mxu0 %v1057
    %1409 = vmatpush.bf16.msra.mxu0 %v1056
    %1410 = vmatmul.bf16.gmra.mxu0 %v407
    %v1411 = vpop.f32.mrf.mxu0
    %v1412 = vadd.f32 %v1398, %v1411
    %v1413 = vpop.f32.mrf.mxu0
    %v1414 = vadd.f32 %v1400, %v1413
    %1415 = vdwg.mxu0
    %v1416 = vmax.f32 %v1412, 0.0
    %v1417 = vmax.f32 %v1414, 0.0
    %v1418 = vld [vmem:[#allocation7] sm:$0xff]
    %v1419 = vld [vmem:[#allocation7 + $0x8] sm:$0xff]
    %v1420 = vld [vmem:[#allocation7 + $0x10] sm:$0xff]
    %v1421 = vld [vmem:[#allocation7 + $0x18] sm:$0xff]
    %v1422 = vld [vmem:[#allocation7 + $0x20] sm:$0xff]
    %v1423 = vld [vmem:[#allocation7 + $0x28] sm:$0xff]
    %v1424 = vld [vmem:[#allocation7 + $0x30] sm:$0xff]
    %v1425 = vld [vmem:[#allocation7 + $0x38] sm:$0xff]
    %v1426 = vld [vmem:[#allocation7 + $0x40] sm:$0xff]
    %v1427 = vld [vmem:[#allocation7 + $0x48] sm:$0xff]
    %v1428 = vld [vmem:[#allocation7 + $0x50] sm:$0xff]
    %v1429 = vld [vmem:[#allocation7 + $0x58] sm:$0xff]
    %v1430 = vld [vmem:[#allocation7 + $0x60] sm:$0xff]
    %v1431 = vld [vmem:[#allocation7 + $0x68] sm:$0xff]
    %v1432 = vld [vmem:[#allocation7 + $0x70] sm:$0xff]
    %v1433 = vld [vmem:[#allocation7 + $0x78] sm:$0xff]
    %v1434 = vld [vmem:[%s4] sm:$0x1]
    %v1436 = vperm.slane %v1434, 0
    %1438 = vmatpush.msra.mxu0 %v1433
    %1439 = vmatpush.msra.mxu0 %v1432
    %1440 = vmatpush.msra.mxu0 %v1431
    %1441 = vmatpush.msra.mxu0 %v1430
    %1442 = vmatpush.msra.mxu0 %v1429
    %1443 = vmatpush.msra.mxu0 %v1428
    %1444 = vmatpush.msra.mxu0 %v1427
    %1445 = vmatpush.msra.mxu0 %v1426
    %1446 = vmatpush.msra.mxu0 %v1425
    %1447 = vmatpush.msra.mxu0 %v1424
    %1448 = vmatpush.msra.mxu0 %v1423
    %1449 = vmatpush.msra.mxu0 %v1422
    %1450 = vmatpush.msra.mxu0 %v1421
    %1451 = vmatpush.msra.mxu0 %v1420
    %1452 = vmatpush.msra.mxu0 %v1419
    %1453 = vmatpush.msra.mxu0 %v1418
    %1454 = vmatmul.f32.gmra.mxu0 %v1416
    %v1455 = vpop.f32.mrf.mxu0
    %v1456 = vadd.f32 %v1436, %v1455
    %1457 = vmatmul.f32.gmra.mxu0 %v1417
    %v1458 = vpop.f32.mrf.mxu0
    %v1459 = vadd.f32 %v1436, %v1458
    %1460 = vdwg.mxu0
    %1461 = vmax.xlane.f32.xlu0 %v1456
    %v1462 = vpop.xlane.xlu0 %1461
    %1463 = vmax.xlane.f32.xlu0 %v1459
    %v1464 = vpop.xlane.xlu0 %1463
    %v1465 = vsub.f32 %v1456, %v1462
    %v1466 = vsub.f32 %v1459, %v1464
    %v1467 = vmul.f32 %v1465, 1.442695
    %v1468 = vpow.pop %v1467
    %v1469 = vmul.f32 %v1466, 1.442695
    %v1470 = vpow.pop %v1469
    %1471 = vadd.xlane.f32.xlu0 %v1468
    %v1472 = vpop.xlane.xlu0 %1471
    %1473 = vadd.xlane.f32.xlu0 %v1470
    %v1474 = vpop.xlane.xlu0 %1473
    %v1475 = vrcp.pop %v1472
    %v1476 = vmul.f32 %v1472, %v1475
    %v1477 = vsub.f32 1.0, %v1476
    %v1478 = vmul.f32 %v1475, %v1477
    %v1479 = vadd.f32 %v1475, %v1478
    %vm1480 = vweird.f32 %v1472
    %vm1481 = vweird.f32 %v1475
    %vm1482 = vmor %vm1480, %vm1481
    %v1483 = vsel %vm1482, %v1475, %v1479
    %v1484 = vand.u32 2147483647, %v1472
    %vm1485 = vcmp.eq.f32.partialorder %v1484, 8.507059e+37
    %v1486 = vand.u32 %v1472, 2147483648
    %v1487 = vor.u32 1.1754944e-38, %v1486
    %v1488 = vsel %vm1485, %v1487, %v1483
    %v1489 = vmul.f32 %v1468, %v1488
    %v1490 = vrcp.pop %v1474
    %v1491 = vmul.f32 %v1474, %v1490
    %v1492 = vsub.f32 1.0, %v1491
    %v1493 = vmul.f32 %v1490, %v1492
    %v1494 = vadd.f32 %v1490, %v1493
    %vm1495 = vweird.f32 %v1474
    %vm1496 = vweird.f32 %v1490
    %vm1497 = vmor %vm1495, %vm1496
    %v1498 = vsel %vm1497, %v1490, %v1494
    %v1499 = vand.u32 2147483647, %v1474
    %vm1500 = vcmp.eq.f32.partialorder %v1499, 8.507059e+37
    %v1501 = vand.u32 %v1474, 2147483648
    %v1502 = vor.u32 1.1754944e-38, %v1501
    %v1503 = vsel %vm1500, %v1502, %v1498
    %v1504 = vmul.f32 %v1470, %v1503
    %1505 = vst [vmem:[#allocation8] sm:$0xff] %v1489
    %1506 = vst [vmem:[#allocation8 + $0x8] sm:$0xff] %v1504
    // Predicated region
    $region34: #{tpu_custom_call.1} parent=1 // pred_check
      _
    $region35: #{tpu_custom_call.1} parent=1 // pred_check_branch
      %1508 = sbr.rel (0) target = $region37
    $region36: #{tpu_custom_call.1} parent=1 // pred_region
      %1510 = vsyncadd [#allocation4], 0
      %s1511 = sshll.u32 [#allocation8], 4
      %s1512 = int_to_ptr.vmem [resolvable:$true] %s1511
      %s1513 = sshll.u32 %s5, 4
      %s1514 = int_to_ptr.hbm [resolvable:$true] %s1513
      %1519 = dma.vmem_to_hbm [thread:$0]  %s1512, 256, %s1514, [#allocation4], 128, 128, 8
    $region37: #{tpu_custom_call.1} parent=1 // pred_fallthru
      _
    // Predicated region
    $region38: #{tpu_custom_call.1} parent=1 // pred_check
      _
    $region39: #{tpu_custom_call.1} parent=1 // pred_check_branch
      %1521 = sbr.rel (0) target = $region41
    $region40: #{tpu_custom_call.1} parent=1 // pred_region
      %1523 = dma.done [#allocation4], 256
    $region41: #{tpu_custom_call.1} parent=1 // pred_fallthru
      _
    %1524 = vsyncpa [#allocation3], 1
    %1525 = vsyncpa [#allocation6], 1
    %1526 = vsyncpa [#allocation4], 1

</llo_original>
